<compile_context>
chip_gen: v5e
topology: v5e:2x2
jax: 0.10.0
libtpu: 0.0.40
codegen_flags: <defaults>
</compile_context>

<pallas_src>
import functools

import numpy as np
import jax
import jax.numpy as jnp
from jax.experimental import pallas as pl
from jax.experimental.pallas import tpu as pltpu


def _round_up(x, m):
    return (x + m - 1) // m * m


def _pick_tile(dim_padded, cap, step):
    """Largest multiple of `step` that is <= cap and divides dim_padded (dim_padded % step == 0)."""
    t = max(step, min(cap, dim_padded))
    t = (t // step) * step
    while dim_padded % t:
        t -= step
    return t


def _chip_config():
    """Generation-specific defaults: int8-MXU usage, tile caps, VMEM budget."""
    try:
        kind = jax.devices()[0].device_kind.lower()
    except Exception:
        kind = ""
    if "v7" in kind:
        # v7x: no integer MXU; 64 MiB VMEM per TensorCore -> smaller budget / tk cap.
        return dict(use_int8_mxu=False, tm_cap=512, tn_cap=512, tk_cap=512,
                    vmem_limit=40 * 1024 * 1024, is_v7=True)
    if "v6" in kind or "v5p" in kind:
        return dict(use_int8_mxu=True, tm_cap=512, tn_cap=512, tk_cap=1024,
                    vmem_limit=64 * 1024 * 1024, is_v7=False)
    if "v5" in kind:  # v5e / "v5 lite": slightly smaller tn per MXU pass
        return dict(use_int8_mxu=True, tm_cap=512, tn_cap=256, tk_cap=1024,
                    vmem_limit=64 * 1024 * 1024, is_v7=False)
    # Unknown / older generation (or interpret): portable bf16 path, conservative tiles.
    return dict(use_int8_mxu=False, tm_cap=256, tn_cap=256, tk_cap=512,
                vmem_limit=32 * 1024 * 1024, is_v7=False)


def _qlinear_mul_add_kernel(x_ref, w_ref,          # int8 tiles: (tm, tk), (tk, tn)
                            colvec_ref,            # (3, tn) f32: [col_scale; col_off; col_rowcoef]
                            mul_ref, add_ref,      # (tm, tn)   (k-invariant, epilogue only)
                            out_ref,               # (tm, tn)   output dtype
                            acc_ref,               # VMEM scratch (tm, tn) int32 (int8 path) / f32
                            rowsum_ref,            # VMEM scratch (tm, 1)  f32
                            *, use_int8_mxu):
    k = pl.program_id(2)

    if use_int8_mxu:
        # v5e / v5p / v6e: native int8 MXU, exact int32 accumulation.
        part = jax.lax.dot_general(
            x_ref[...], w_ref[...],
            dimension_numbers=(((1,), (0,)), ((), ())),
            preferred_element_type=jnp.int32)
    else:
        # Portable path (required on v7x): int8 -> bf16 is exact, MXU accumulates in f32.
        # TODO(synk): optionally accept a pre-cast bf16 (K,N) weight to skip the in-kernel
        # weight cast on v7x when the weight is reused across calls.
        part = jnp.dot(x_ref[...].astype(jnp.bfloat16),
                       w_ref[...].astype(jnp.bfloat16),
                       preferred_element_type=jnp.float32)

    # Per-step row-sum of the already-resident int8 activation tile (rides on VPU slack).
    rs = jnp.sum(x_ref[...].astype(jnp.float32), axis=1, keepdims=True)

    @pl.when(k == 0)
    def _init():
        acc_ref[...] = part
        rowsum_ref[...] = rs

    @pl.when(k != 0)
    def _accum():
        acc_ref[...] += part
        rowsum_ref[...] += rs

    @pl.when(k == pl.num_programs(2) - 1)
    def _finalize():
        cv = colvec_ref[...]
        col_scale = cv[0:1, :]
        col_off = cv[1:2, :]
        col_rowcoef = cv[2:3, :]
        # Dequant + bias, applied once per output tile:
        #   y = acc*col_scale + col_off - rowsum(x)*col_rowcoef
        y = (acc_ref[...].astype(jnp.float32) * col_scale
             + col_off
             - rowsum_ref[...] * col_rowcoef)
        # Fused torch.mul / torch.add epilogue + final cast.
        y = y * mul_ref[...].astype(jnp.float32) + add_ref[...].astype(jnp.float32)
        out_ref[...] = y.astype(out_ref.dtype)


def prepare_qlinear_weights(weight, bias, weight_scales, weight_zero_points,
                            inp_scales, inp_zero_points):
    """One-time (cacheable) weight-side precompute.

    Returns (wt_padded (Kp, Np) int8, colvec_padded (3, Np) f32, N, K)."""
    N, K = weight.shape
    Kp = _round_up(K, 128)
    Np = _round_up(N, 128)

    in_s = jnp.asarray(inp_scales, jnp.float32).reshape(())
    in_zp = jnp.asarray(inp_zero_points, jnp.float32).reshape(())
    w_s = jnp.asarray(weight_scales, jnp.float32).reshape((N,))
    w_zp = jnp.asarray(weight_zero_points, jnp.float32).reshape((N,))
    b = jnp.asarray(bias, jnp.float32).reshape((N,))

    w_colsum = jnp.sum(weight.astype(jnp.int32), axis=1).astype(jnp.float32)    # (N,)

    col_scale = in_s * w_s                                                       # (N,)
    col_rowcoef = col_scale * w_zp                                               # (N,)
    col_off = col_scale * (jnp.float32(K) * in_zp * w_zp - in_zp * w_colsum) + b  # (N,)

    wt_p = jnp.pad(weight.T, ((0, Kp - K), (0, Np - N)))                         # (Kp, Np)
    colvec = jnp.stack([col_scale, col_off, col_rowcoef], axis=0)                # (3, N)
    colvec_p = jnp.pad(colvec, ((0, 0), (0, Np - N)))                            # (3, Np)
    return wt_p, colvec_p, N, K


def qlinear_mul_add(inp, weight, bias, inp_scales, inp_zero_points,
                    weight_scales, weight_zero_points, mul_input, add_input,
                    output_dtype=jnp.float32, *, prepared=None,
                    use_int8_mxu=None, tile_caps=None):
    """inp (M,K) int8, weight (N,K) int8 (nn.Linear layout), bias (N,), per-tensor activation
    quant params, per-channel weight quant params, mul/add (M,N). Returns (M,N) output_dtype.
    `prepared` may be the cached result of prepare_qlinear_weights() (static-weight inference)."""
    M, K = inp.shape
    if prepared is None:
        prepared = prepare_qlinear_weights(weight, bias, weight_scales,
                                           weight_zero_points, inp_scales, inp_zero_points)
    wt_p, colvec_p, N, Kw = prepared
    assert K == Kw
    assert mul_input.shape == (M, N) and add_input.shape == (M, N)
    Kp, Np = wt_p.shape

    cfg = _chip_config()
    if use_int8_mxu is None:
        use_int8_mxu = cfg["use_int8_mxu"]
    if cfg["is_v7"]:
        use_int8_mxu = False  # hard guard: no integer MXU on v7x

    if tile_caps is not None:
        tm_cap, tn_cap, tk_cap = tile_caps
    else:
        tm_cap, tn_cap, tk_cap = cfg["tm_cap"], cfg["tn_cap"], cfg["tk_cap"]

    # Minimal legal padding; tiles are divisors of the padded dims (no over-padding).
    Mp = _round_up(M, 32)
    tm = _pick_tile(Mp, tm_cap, 32)
    tn = _pick_tile(Np, tn_cap, 128)
    tk = _pick_tile(Kp, tk_cap, 128)

    x_p = jnp.pad(inp, ((0, Mp - M), (0, Kp - K)))
    mul_p = jnp.pad(mul_input, ((0, Mp - M), (0, Np - N)))
    add_p = jnp.pad(add_input, ((0, Mp - M), (0, Np - N)))

    grid = (Mp // tm, Np // tn, Kp // tk)

    out_bytes = jnp.dtype(output_dtype).itemsize
    cost = pl.CostEstimate(
        flops=int(2 * Mp * Np * Kp),
        transcendentals=0,
        bytes_accessed=int(Mp * Kp + Kp * Np + 2 * Mp * Np * 4 + Mp * Np * out_bytes))

    def _run(flag):
        acc_dtype = jnp.int32 if flag else jnp.float32
        kern = functools.partial(_qlinear_mul_add_kernel, use_int8_mxu=flag)
        fn = pl.pallas_call(
            kern,
            out_shape=jax.ShapeDtypeStruct((Mp, Np), output_dtype),
            grid_spec=pltpu.PrefetchScalarGridSpec(
                num_scalar_prefetch=0,
                grid=grid,
                in_specs=[
                    pl.BlockSpec((tm, tk), lambda i, j, k: (i, k)),   # int8 activations
                    pl.BlockSpec((tk, tn), lambda i, j, k: (k, j)),   # int8 weight (K, N)
                    pl.BlockSpec((3, tn), lambda i, j, k: (0, j)),    # packed column vectors
                    pl.BlockSpec((tm, tn), lambda i, j, k: (i, j)),   # mul_input  (k-invariant)
                    pl.BlockSpec((tm, tn), lambda i, j, k: (i, j)),   # add_input  (k-invariant)
                ],
                out_specs=pl.BlockSpec((tm, tn), lambda i, j, k: (i, j)),
                scratch_shapes=[pltpu.VMEM((tm, tn), acc_dtype),
                                pltpu.VMEM((tm, 1), jnp.float32)],
            ),
            compiler_params=pltpu.CompilerParams(
                dimension_semantics=("parallel", "parallel", "arbitrary"),
                vmem_limit_bytes=cfg["vmem_limit"]),
            cost_estimate=cost,
        )
        return fn(x_p, wt_p, colvec_p, mul_p, add_p)

    if use_int8_mxu:
        try:
            out_p = jax.block_until_ready(_run(True))
        except Exception:
            # Safety net: toolchain/chip rejected the integer-MXU path -> portable bf16 path.
            out_p = _run(False)
    else:
        out_p = _run(False)

    return out_p[:M, :N]


def _reference_np(inp, weight, bias, in_s, in_zp, w_s, w_zp, mul_input, add_input):
    """float64 numpy reference of the fused op."""
    x = np.asarray(inp, np.float64)
    w = np.asarray(weight, np.float64)
    x_dq = (x - float(in_zp)) * float(in_s)
    w_dq = (w - np.asarray(w_zp, np.float64)[:, None]) * np.asarray(w_s, np.float64)[:, None]
    y = x_dq @ w_dq.T + np.asarray(bias, np.float64)[None, :]
    y = y * np.asarray(mul_input, np.float64) + np.asarray(add_input, np.float64)
    return y


if __name__ == "__main__":
    key = jax.random.PRNGKey(0)

    def make_case(case_key, M, K, N):
        ks = jax.random.split(case_key, 6)
        inp = jax.random.randint(ks[0], (M, K), -128, 128, dtype=jnp.int32).astype(jnp.int8)
        weight = jax.random.randint(ks[1], (N, K), -128, 128, dtype=jnp.int32).astype(jnp.int8)
        bias = jax.random.normal(ks[2], (N,), dtype=jnp.float32)
        inp_scales = jnp.float32(0.02)                                   # per-tensor act scale
        inp_zero_points = jnp.int32(3)                                   # per-tensor act zp
        weight_scales = 0.01 + 0.001 * jnp.arange(N, dtype=jnp.float32)  # per-channel
        weight_zero_points = jax.random.randint(ks[3], (N,), -4, 5, dtype=jnp.int32)
        mul_input = jax.random.normal(ks[4], (M, N), dtype=jnp.float32)
        add_input = jax.random.normal(ks[5], (M, N), dtype=jnp.float32)
        return (inp, weight, bias, inp_scales, inp_zero_points,
                weight_scales, weight_zero_points, mul_input, add_input)

    k1, k2 = jax.random.split(key)

    # Case 1: tiny single-tile shape from the original unit test (auto chip config, f32 out).
    M, K, N = 8, 32, 64
    args1 = make_case(k1, M, K, N)
    out1 = jax.block_until_ready(qlinear_mul_add(*args1, output_dtype=jnp.float32))
    ref1 = _reference_np(*args1)
    assert out1.shape == (M, N) and out1.dtype == jnp.float32
    assert np.allclose(np.asarray(out1, np.float64), ref1, rtol=5e-4, atol=1e-2), \
        f"case1 mismatch: max abs err {np.max(np.abs(np.asarray(out1, np.float64) - ref1))}"

    # Case 2: non-multiple M/N/K exercising minimal padding, multi-tile i/j, multi-step K
    # accumulation, and the cached prepared-weights path (small tile caps force grid > 1).
    M, K, N = 72, 320, 192
    args2 = make_case(k2, M, K, N)
    prepared = prepare_qlinear_weights(args2[1], args2[2], args2[5], args2[6],
                                       args2[3], args2[4])
    out2 = jax.block_until_ready(
        qlinear_mul_add(*args2, output_dtype=jnp.float32,
                        prepared=prepared, tile_caps=(64, 128, 128)))
    ref2 = _reference_np(*args2)
    assert out2.shape == (M, N) and out2.dtype == jnp.float32
    assert np.allclose(np.asarray(out2, np.float64), ref2, rtol=5e-4, atol=1e-2), \
        f"case2 mismatch: max abs err {np.max(np.abs(np.asarray(out2, np.float64) - ref2))}"

    # Case 3: same as case 1 but with bfloat16 output_dtype (final .to(output_dtype) cast).
    out3 = jax.block_until_ready(qlinear_mul_add(*args1, output_dtype=jnp.bfloat16))
    assert out3.shape == (8, 64) and out3.dtype == jnp.bfloat16
    out3_f = np.asarray(out3, np.float64)
    tol = 2e-2 * max(1.0, float(np.max(np.abs(ref1))))
    assert np.allclose(out3_f, ref1, rtol=2e-2, atol=tol), \
        f"case3 (bf16) mismatch: max abs err {np.max(np.abs(out3_f - ref1))}"

    print("KERNEL_OK")
</pallas_src>

<mosaic_0001>
module attributes {stable_mosaic.version = 11 : i64} {
  func.func @_qlinear_mul_add_kernel(%arg0: i32, %arg1: i32, %arg2: i32, %arg3: memref<32x128xi8, #tpu.memory_space<vmem>>, %arg4: memref<128x128xi8, #tpu.memory_space<vmem>>, %arg5: memref<3x128xf32, #tpu.memory_space<vmem>>, %arg6: memref<32x128xf32, #tpu.memory_space<vmem>>, %arg7: memref<32x128xf32, #tpu.memory_space<vmem>>, %arg8: memref<32x128xf32, #tpu.memory_space<vmem>>, %arg9: memref<32x128xf32, #tpu.memory_space<vmem>>, %arg10: memref<32x1xf32, #tpu.memory_space<vmem>>) attributes {dimension_semantics = [#tpu.dimension_semantics<parallel>, #tpu.dimension_semantics<parallel>, #tpu.dimension_semantics<arbitrary>], iteration_bounds = array<i64: 1, 1, 1>, scalar_prefetch = 0 : i64, scratch_operands = 2 : i64, tpu.core_type = #tpu.core_type<tc>, window_params = [{transform_indices = @transform_0, window_bounds = array<i64: 32, 128>}, {transform_indices = @transform_1, window_bounds = array<i64: 128, 128>}, {transform_indices = @transform_2, window_bounds = array<i64: 3, 128>}, {transform_indices = @transform_3, window_bounds = array<i64: 32, 128>}, {transform_indices = @transform_4, window_bounds = array<i64: 32, 128>}, {transform_indices = @transform_5, window_bounds = array<i64: 32, 128>}]} {
    %c0 = arith.constant 0 : index
    %c0_0 = arith.constant 0 : index
    %0 = vector.load %arg3[%c0, %c0_0] : memref<32x128xi8, #tpu.memory_space<vmem>>, vector<32x128xi8>
    %1 = arith.sitofp %0 : vector<32x128xi8> to vector<32x128xbf16>
    %c0_1 = arith.constant 0 : index
    %c0_2 = arith.constant 0 : index
    %2 = vector.load %arg4[%c0_1, %c0_2] : memref<128x128xi8, #tpu.memory_space<vmem>>, vector<128x128xi8>
    %3 = arith.sitofp %2 : vector<128x128xi8> to vector<128x128xbf16>
    %cst = arith.constant dense<0.000000e+00> : vector<32x128xf32>
    %4 = tpu.matmul %1, %3, %cst {dimension_numbers = #tpu.dot_dimension_numbers<[1], [0], [0], [1], [0, 0, 1, 1], [], []>} : vector<32x128xbf16>, vector<128x128xbf16>, vector<32x128xf32> -> vector<32x128xf32>
    %c0_3 = arith.constant 0 : index
    %c0_4 = arith.constant 0 : index
    %5 = vector.load %arg3[%c0_3, %c0_4] : memref<32x128xi8, #tpu.memory_space<vmem>>, vector<32x128xi8>
    %6 = arith.sitofp %5 : vector<32x128xi8> to vector<32x128xf32>
    %cst_5 = arith.constant dense<0.000000e+00> : vector<32xf32>
    %7 = vector.multi_reduction <add>, %6, %cst_5 [1] : vector<32x128xf32> to vector<32xf32>
    %8 = vector.shape_cast %7 : vector<32xf32> to vector<32x1xf32>
    %c0_i32 = arith.constant 0 : i32
    %9 = arith.cmpi eq, %arg2, %c0_i32 : i32
    %10 = arith.extui %9 : i1 to i32
    %c0_i32_6 = arith.constant 0 : i32
    %11 = arith.cmpi ne, %10, %c0_i32_6 : i32
    scf.if %11 {
      %c0_11 = arith.constant 0 : index
      %c0_12 = arith.constant 0 : index
      %18 = vector.load %arg9[%c0_11, %c0_12] : memref<32x128xf32, #tpu.memory_space<vmem>>, vector<32x128xf32>
      tpu.vector_store %arg9[%c0_11, %c0_12], %4 {strides = array<i32>} : memref<32x128xf32, #tpu.memory_space<vmem>>, vector<32x128xf32>,
      %c0_13 = arith.constant 0 : index
      %c0_14 = arith.constant 0 : index
      %19 = vector.load %arg10[%c0_13, %c0_14] : memref<32x1xf32, #tpu.memory_space<vmem>>, vector<32x1xf32>
      tpu.vector_store %arg10[%c0_13, %c0_14], %8 {strides = array<i32>} : memref<32x1xf32, #tpu.memory_space<vmem>>, vector<32x1xf32>,
    } else {
    }
    %c0_i32_7 = arith.constant 0 : i32
    %12 = arith.cmpi ne, %arg2, %c0_i32_7 : i32
    %13 = arith.extui %12 : i1 to i32
    %c0_i32_8 = arith.constant 0 : i32
    %14 = arith.cmpi ne, %13, %c0_i32_8 : i32
    scf.if %14 {
      %c0_11 = arith.constant 0 : index
      %c0_12 = arith.constant 0 : index
      %18 = vector.load %arg9[%c0_11, %c0_12] : memref<32x128xf32, #tpu.memory_space<vmem>>, vector<32x128xf32>
      %19 = arith.addf %18, %4 : vector<32x128xf32>
      %c0_13 = arith.constant 0 : index
      %c0_14 = arith.constant 0 : index
      %20 = vector.load %arg9[%c0_13, %c0_14] : memref<32x128xf32, #tpu.memory_space<vmem>>, vector<32x128xf32>
      tpu.vector_store %arg9[%c0_13, %c0_14], %19 {strides = array<i32>} : memref<32x128xf32, #tpu.memory_space<vmem>>, vector<32x128xf32>,
      %c0_15 = arith.constant 0 : index
      %c0_16 = arith.constant 0 : index
      %21 = vector.load %arg10[%c0_15, %c0_16] : memref<32x1xf32, #tpu.memory_space<vmem>>, vector<32x1xf32>
      %22 = arith.addf %21, %8 : vector<32x1xf32>
      %c0_17 = arith.constant 0 : index
      %c0_18 = arith.constant 0 : index
      %23 = vector.load %arg10[%c0_17, %c0_18] : memref<32x1xf32, #tpu.memory_space<vmem>>, vector<32x1xf32>
      tpu.vector_store %arg10[%c0_17, %c0_18], %22 {strides = array<i32>} : memref<32x1xf32, #tpu.memory_space<vmem>>, vector<32x1xf32>,
    } else {
    }
    %c0_i32_9 = arith.constant 0 : i32
    %15 = arith.cmpi eq, %arg2, %c0_i32_9 : i32
    %16 = arith.extui %15 : i1 to i32
    %c0_i32_10 = arith.constant 0 : i32
    %17 = arith.cmpi ne, %16, %c0_i32_10 : i32
    scf.if %17 {
      %c0_11 = arith.constant 0 : index
      %c0_12 = arith.constant 0 : index
      %18 = vector.load %arg5[%c0_11, %c0_12] : memref<3x128xf32, #tpu.memory_space<vmem>>, vector<3x128xf32>
      %19 = vector.extract_strided_slice %18 {offsets = [0, 0], sizes = [1, 128], strides = [1, 1]} : vector<3x128xf32> to vector<1x128xf32>
      %20 = vector.extract_strided_slice %18 {offsets = [1, 0], sizes = [1, 128], strides = [1, 1]} : vector<3x128xf32> to vector<1x128xf32>
      %21 = vector.extract_strided_slice %18 {offsets = [2, 0], sizes = [1, 128], strides = [1, 1]} : vector<3x128xf32> to vector<1x128xf32>
      %c0_13 = arith.constant 0 : index
      %c0_14 = arith.constant 0 : index
      %22 = vector.load %arg9[%c0_13, %c0_14] : memref<32x128xf32, #tpu.memory_space<vmem>>, vector<32x128xf32>
      %23 = vector.broadcast %19 : vector<1x128xf32> to vector<32x128xf32>
      %24 = arith.mulf %22, %23 : vector<32x128xf32>
      %25 = vector.broadcast %20 : vector<1x128xf32> to vector<32x128xf32>
      %26 = arith.addf %24, %25 : vector<32x128xf32>
      %c0_15 = arith.constant 0 : index
      %c0_16 = arith.constant 0 : index
      %27 = vector.load %arg10[%c0_15, %c0_16] : memref<32x1xf32, #tpu.memory_space<vmem>>, vector<32x1xf32>
      %28 = vector.broadcast %27 : vector<32x1xf32> to vector<32x128xf32>
      %29 = vector.broadcast %21 : vector<1x128xf32> to vector<32x128xf32>
      %30 = arith.mulf %28, %29 : vector<32x128xf32>
      %31 = arith.subf %26, %30 : vector<32x128xf32>
      %c0_17 = arith.constant 0 : index
      %c0_18 = arith.constant 0 : index
      %32 = vector.load %arg6[%c0_17, %c0_18] : memref<32x128xf32, #tpu.memory_space<vmem>>, vector<32x128xf32>
      %33 = arith.mulf %31, %32 : vector<32x128xf32>
      %c0_19 = arith.constant 0 : index
      %c0_20 = arith.constant 0 : index
      %34 = vector.load %arg7[%c0_19, %c0_20] : memref<32x128xf32, #tpu.memory_space<vmem>>, vector<32x128xf32>
      %35 = arith.addf %33, %34 : vector<32x128xf32>
      %c0_21 = arith.constant 0 : index
      %c0_22 = arith.constant 0 : index
      %36 = vector.load %arg8[%c0_21, %c0_22] : memref<32x128xf32, #tpu.memory_space<vmem>>, vector<32x128xf32>
      tpu.vector_store %arg8[%c0_21, %c0_22], %35 {strides = array<i32>} : memref<32x128xf32, #tpu.memory_space<vmem>>, vector<32x128xf32>,
    } else {
    }
    return
  }
  func.func @transform_0(%arg0: i32, %arg1: i32, %arg2: i32) -> (i32, i32) {
    %c0_i32 = arith.constant 0 : i32
    return %arg0, %arg2 : i32, i32
  }
  func.func @transform_1(%arg0: i32, %arg1: i32, %arg2: i32) -> (i32, i32) {
    %c0_i32 = arith.constant 0 : i32
    return %arg2, %arg1 : i32, i32
  }
  func.func @transform_2(%arg0: i32, %arg1: i32, %arg2: i32) -> (i32, i32) {
    %c0_i32 = arith.constant 0 : i32
    %c0_i32_0 = arith.constant 0 : i32
    return %c0_i32, %arg1 : i32, i32
  }
  func.func @transform_3(%arg0: i32, %arg1: i32, %arg2: i32) -> (i32, i32) {
    %c0_i32 = arith.constant 0 : i32
    return %arg0, %arg1 : i32, i32
  }
  func.func @transform_4(%arg0: i32, %arg1: i32, %arg2: i32) -> (i32, i32) {
    %c0_i32 = arith.constant 0 : i32
    return %arg0, %arg1 : i32, i32
  }
  func.func @transform_5(%arg0: i32, %arg1: i32, %arg2: i32) -> (i32, i32) {
    %c0_i32 = arith.constant 0 : i32
    return %arg0, %arg1 : i32, i32
  }
}

</mosaic_0001>

<llo_original>
// kernel: tpu_custom_call.1
$region0: #{tpu_custom_call.1}
  #allocation0 [shape = 'u32[]', space=smem, size = 0x4, offset = 0x4, fixed_abs, tag = 'smem constant byte address 0x4 - core index']
  #allocation1 [shape = 'u32[72,128]{1,0:T(1,128)}', space=vmem, size = 0x9000, scoped, tag = 'internal scratch']
  #allocation2 [shape = 'f32[32,128]{1,0:T(8,128)}', space=vmem, size = 0x4000, scoped, tag = 'scratch operand']
  #allocation3 [shape = 'f32[32,1]{1,0:T(8,128)}', space=vmem, size = 0x4000, scoped, tag = 'scratch operand']
  %s0 = inlined_call_operand.hbm [shape: s8[32,128], index: 0, kind: input, shape index: {}]
  %s1 = inlined_call_operand.hbm [shape: s8[128,128], index: 1, kind: input, shape index: {}]
  %s2 = inlined_call_operand.hbm [shape: f32[3,128], index: 2, kind: input, shape index: {}]
  %s3 = inlined_call_operand.hbm [shape: f32[32,128], index: 3, kind: input, shape index: {}]
  %s4 = inlined_call_operand.hbm [shape: f32[32,128], index: 4, kind: input, shape index: {}]
  %s5 = inlined_call_operand.hbm [shape: f32[32,128], index: 5, kind: output, shape index: {}]
  %s6 = sld [smem:[#allocation0]]
  $region62: #{tpu_custom_call.1} parent=0
    _
  %s8 = ssub.s32 1, %s6
  %s9 = scalar_select 0, %s8, %s6
  $region1: #{tpu_custom_call.1} parent=0
    #allocation4 [shape = 'u8[4096]{0}', space=vmem, size = 0x1000, scoped, tag = 'input window, operand 0, single buffered']
    #allocation5 [shape = 's32[1]{0}', space=sflag, size = 0x4, scoped, tag = 'scoped memory for tpu_custom_call.1']
    #allocation6 [shape = 's32[1]{0}', space=sflag, size = 0x4, scoped, tag = 'scoped memory for tpu_custom_call.1']
    #allocation7 [shape = 'u8[16384]{0}', space=vmem, size = 0x4000, scoped, tag = 'input window, operand 1, single buffered']
    #allocation8 [shape = 's32[1]{0}', space=sflag, size = 0x4, scoped, tag = 'scoped memory for tpu_custom_call.1']
    #allocation9 [shape = 'u8[2048]{0}', space=vmem, size = 0x800, scoped, tag = 'input window, operand 2, single buffered']
    #allocation10 [shape = 'u8[16384]{0}', space=vmem, size = 0x4000, scoped, tag = 'input window, operand 3, single buffered']
    #allocation11 [shape = 's32[1]{0}', space=sflag, size = 0x4, scoped, tag = 'scoped memory for tpu_custom_call.1']
    #allocation12 [shape = 'u8[16384]{0}', space=vmem, size = 0x4000, scoped, tag = 'input window, operand 4, single buffered']
    #allocation13 [shape = 'u8[16384]{0}', space=vmem, size = 0x4000, scoped, tag = 'output window, operand 0, single buffered']
    %10 = vsyncpa [#allocation5], 0
    %11 = vsyncpa [#allocation8], 0
    %12 = vsyncpa [#allocation11], 0
    %13 = vsyncpa [#allocation6], 0
    // Predicated region
    $region2: #{tpu_custom_call.1} parent=1 // pred_check
      _
    $region3: #{tpu_custom_call.1} parent=1 // pred_check_branch
      %15 = sbr.rel (0) target = $region5
    $region4: #{tpu_custom_call.1} parent=1 // pred_region
      %17 = vsyncadd [#allocation5], 0
      %s19 = sshll.u32 %s0, 4
      %s20 = int_to_ptr.hbm [resolvable:$true] %s19
      %s21 = sshll.u32 [#allocation4], 4
      %s22 = int_to_ptr.vmem [resolvable:$true] %s21
      %24 = dma.hbm_to_vmem [thread:$0]  %s20, 128, %s22, [#allocation5]
    $region5: #{tpu_custom_call.1} parent=1 // pred_fallthru
      _
    // Predicated region
    $region6: #{tpu_custom_call.1} parent=1 // pred_check
      _
    $region7: #{tpu_custom_call.1} parent=1 // pred_check_branch
      %26 = sbr.rel (0) target = $region9
    $region8: #{tpu_custom_call.1} parent=1 // pred_region
      %28 = vsyncadd [#allocation8], 0
      %s29 = sshll.u32 %s1, 4
      %s30 = int_to_ptr.hbm [resolvable:$true] %s29
      %s31 = sshll.u32 [#allocation7], 4
      %s32 = int_to_ptr.vmem [resolvable:$true] %s31
      %37 = dma.hbm_to_vmem [thread:$0]  %s30, 512, %s32, [#allocation8], 128, 128, 8
    $region9: #{tpu_custom_call.1} parent=1 // pred_fallthru
      _
    // Predicated region
    $region10: #{tpu_custom_call.1} parent=1 // pred_check
      _
    $region11: #{tpu_custom_call.1} parent=1 // pred_check_branch
      %39 = sbr.rel (0) target = $region13
    $region12: #{tpu_custom_call.1} parent=1 // pred_region
      %41 = vsyncadd [#allocation8], 0
      %s43 = sshll.u32 %s2, 4
      %s44 = int_to_ptr.hbm [resolvable:$true] %s43
      %s45 = sshll.u32 [#allocation9], 4
      %s46 = int_to_ptr.vmem [resolvable:$true] %s45
      %48 = dma.hbm_to_vmem [thread:$0]  %s44, 64, %s46, [#allocation8]
    $region13: #{tpu_custom_call.1} parent=1 // pred_fallthru
      _
    // Predicated region
    $region14: #{tpu_custom_call.1} parent=1 // pred_check
      _
    $region15: #{tpu_custom_call.1} parent=1 // pred_check_branch
      %50 = sbr.rel (0) target = $region17
    $region16: #{tpu_custom_call.1} parent=1 // pred_region
      %52 = vsyncadd [#allocation11], 0
      %s53 = sshll.u32 %s3, 4
      %s54 = int_to_ptr.hbm [resolvable:$true] %s53
      %s55 = sshll.u32 [#allocation10], 4
      %s56 = int_to_ptr.vmem [resolvable:$true] %s55
      %61 = dma.hbm_to_vmem [thread:$0]  %s54, 512, %s56, [#allocation11], 128, 128, 8
    $region17: #{tpu_custom_call.1} parent=1 // pred_fallthru
      _
    // Predicated region
    $region18: #{tpu_custom_call.1} parent=1 // pred_check
      _
    $region19: #{tpu_custom_call.1} parent=1 // pred_check_branch
      %63 = sbr.rel (0) target = $region21
    $region20: #{tpu_custom_call.1} parent=1 // pred_region
      %65 = vsyncadd [#allocation11], 0
      %s66 = sshll.u32 %s4, 4
      %s67 = int_to_ptr.hbm [resolvable:$true] %s66
      %s68 = sshll.u32 [#allocation12], 4
      %s69 = int_to_ptr.vmem [resolvable:$true] %s68
      %74 = dma.hbm_to_vmem [thread:$0]  %s67, 512, %s69, [#allocation11], 128, 128, 8
    $region21: #{tpu_custom_call.1} parent=1 // pred_fallthru
      _
    // Predicated region
    $region22: #{tpu_custom_call.1} parent=1 // pred_check
      _
    $region23: #{tpu_custom_call.1} parent=1 // pred_check_branch
      %76 = sbr.rel (0) target = $region25
    $region24: #{tpu_custom_call.1} parent=1 // pred_region
      %78 = dma.done [#allocation5], 128
    $region25: #{tpu_custom_call.1} parent=1 // pred_fallthru
      _
    // Predicated region
    $region26: #{tpu_custom_call.1} parent=1 // pred_check
      _
    $region27: #{tpu_custom_call.1} parent=1 // pred_check_branch
      %80 = sbr.rel (0) target = $region29
    $region28: #{tpu_custom_call.1} parent=1 // pred_region
      %82 = dma.done [#allocation8], 512
    $region29: #{tpu_custom_call.1} parent=1 // pred_fallthru
      _
    // Predicated region
    $region30: #{tpu_custom_call.1} parent=1 // pred_check
      _
    $region31: #{tpu_custom_call.1} parent=1 // pred_check_branch
      %84 = sbr.rel (0) target = $region33
    $region32: #{tpu_custom_call.1} parent=1 // pred_region
      %86 = dma.done [#allocation8], 64
    $region33: #{tpu_custom_call.1} parent=1 // pred_fallthru
      _
    // Predicated region
    $region34: #{tpu_custom_call.1} parent=1 // pred_check
      _
    $region35: #{tpu_custom_call.1} parent=1 // pred_check_branch
      %88 = sbr.rel (0) target = $region37
    $region36: #{tpu_custom_call.1} parent=1 // pred_region
      %90 = dma.done [#allocation11], 512
    $region37: #{tpu_custom_call.1} parent=1 // pred_fallthru
      _
    // Predicated region
    $region38: #{tpu_custom_call.1} parent=1 // pred_check
      _
    $region39: #{tpu_custom_call.1} parent=1 // pred_check_branch
      %92 = sbr.rel (0) target = $region41
    $region40: #{tpu_custom_call.1} parent=1 // pred_region
      %94 = dma.done [#allocation11], 512
    $region41: #{tpu_custom_call.1} parent=1 // pred_fallthru
      _
    %v95 = vld [vmem:[#allocation4] sm:$0xff]
    %v96 = vunpack.c.0.s8 %v95
    %v97 = vunpack.c.1.s8 %v95
    %v98 = vunpack.c.2.s8 %v95
    %v99 = vunpack.c.3.s8 %v95
    %v100 = vcvt.s32.f32 %v96
    %v101 = vcvt.s32.f32 %v97
    %v102 = vcvt.s32.f32 %v98
    %v103 = vcvt.s32.f32 %v99
    %v104 = vpack.c.bf16 %v101, %v100
    %v105 = vpack.c.bf16 %v103, %v102
    %v106 = vld [vmem:[#allocation7] sm:$0xff]
    %v107 = vld [vmem:[#allocation7 + $0x8] sm:$0xff]
    %v108 = vld [vmem:[#allocation7 + $0x10] sm:$0xff]
    %v109 = vld [vmem:[#allocation7 + $0x18] sm:$0xff]
    %v110 = vunpack.c.0.s8 %v106
    %v111 = vunpack.c.1.s8 %v106
    %v112 = vunpack.c.2.s8 %v106
    %v113 = vunpack.c.3.s8 %v106
    %v114 = vunpack.c.0.s8 %v107
    %v115 = vunpack.c.1.s8 %v107
    %v116 = vunpack.c.2.s8 %v107
    %v117 = vunpack.c.3.s8 %v107
    %v118 = vunpack.c.0.s8 %v108
    %v119 = vunpack.c.1.s8 %v108
    %v120 = vunpack.c.2.s8 %v108
    %v121 = vunpack.c.3.s8 %v108
    %v122 = vunpack.c.0.s8 %v109
    %v123 = vunpack.c.1.s8 %v109
    %v124 = vunpack.c.2.s8 %v109
    %v125 = vunpack.c.3.s8 %v109
    %v126 = vcvt.s32.f32 %v110
    %v127 = vcvt.s32.f32 %v111
    %v128 = vcvt.s32.f32 %v112
    %v129 = vcvt.s32.f32 %v113
    %v130 = vcvt.s32.f32 %v114
    %v131 = vcvt.s32.f32 %v115
    %v132 = vcvt.s32.f32 %v116
    %v133 = vcvt.s32.f32 %v117
    %v134 = vcvt.s32.f32 %v118
    %v135 = vcvt.s32.f32 %v119
    %v136 = vcvt.s32.f32 %v120
    %v137 = vcvt.s32.f32 %v121
    %v138 = vcvt.s32.f32 %v122
    %v139 = vcvt.s32.f32 %v123
    %v140 = vcvt.s32.f32 %v124
    %v141 = vcvt.s32.f32 %v125
    %v142 = vpack.c.bf16 %v127, %v126
    %v143 = vpack.c.bf16 %v129, %v128
    %v144 = vpack.c.bf16 %v131, %v130
    %v145 = vpack.c.bf16 %v133, %v132
    %v146 = vpack.c.bf16 %v135, %v134
    %v147 = vpack.c.bf16 %v137, %v136
    %v148 = vpack.c.bf16 %v139, %v138
    %v149 = vpack.c.bf16 %v141, %v140
    %150 = vmatpush.bf16.msra.mxu0 %v149
    %151 = vmatpush.bf16.msra.mxu0 %v148
    %152 = vmatpush.bf16.msra.mxu0 %v147
    %153 = vmatpush.bf16.msra.mxu0 %v146
    %154 = vmatpush.bf16.msra.mxu0 %v145
    %155 = vmatpush.bf16.msra.mxu0 %v144
    %156 = vmatpush.bf16.msra.mxu0 %v143
    %157 = vmatpush.bf16.msra.mxu0 %v142
    %158 = vmatmul.bf16.gmra.mxu0 %v104
    %v159 = vpop.f32.mrf.mxu0
    %v160 = vadd.f32 0.0, %v159
    %v161 = vpop.f32.mrf.mxu0
    %v162 = vadd.f32 0.0, %v161
    %163 = vmatmul.bf16.gmra.mxu0 %v105
    %v164 = vpop.f32.mrf.mxu0
    %v165 = vadd.f32 0.0, %v164
    %v166 = vpop.f32.mrf.mxu0
    %v167 = vadd.f32 0.0, %v166
    %168 = vdwg.mxu0
    %169 = vadd.xlane.f32.xlu0 %v100
    %v170 = vpop.xlane.xlu0 %169
    %171 = vadd.xlane.f32.xlu0 %v101
    %v172 = vpop.xlane.xlu0 %171
    %173 = vadd.xlane.f32.xlu0 %v102
    %v174 = vpop.xlane.xlu0 %173
    %175 = vadd.xlane.f32.xlu0 %v103
    %v176 = vpop.xlane.xlu0 %175
    %p177 = scmp.eq.s32.totalorder 0, 0
    // Predicated region
    $region42: #{tpu_custom_call.1} parent=1 // pred_check
      %p178 = pneg %p177
    $region43: #{tpu_custom_call.1} parent=1 // pred_check_branch
      %180 = sbr.rel (%p178) target = $region45
    $region44: #{tpu_custom_call.1} parent=1 // pred_region
      %181 = vst [vmem:[#allocation2] sm:$0xff] %v160
      %182 = vst [vmem:[#allocation2 + $0x8] sm:$0xff] %v162
      %183 = vst [vmem:[#allocation2 + $0x10] sm:$0xff] %v165
      %184 = vst [vmem:[#allocation2 + $0x18] sm:$0xff] %v167
      %vm185 = vcmask 7168
      %186 = vst.msk [vmem:[#allocation3] sm:$0xff] %vm185, %v170
      %187 = vst.msk [vmem:[#allocation3 + $0x8] sm:$0xff] %vm185, %v172
      %188 = vst.msk [vmem:[#allocation3 + $0x10] sm:$0xff] %vm185, %v174
      %189 = vst.msk [vmem:[#allocation3 + $0x18] sm:$0xff] %vm185, %v176
    $region45: #{tpu_custom_call.1} parent=1 // pred_fallthru
      _
    %p190 = scmp.ne.s32.totalorder 0, 0
    // Predicated region
    $region46: #{tpu_custom_call.1} parent=1 // pred_check
      %p191 = pneg %p190
    $region47: #{tpu_custom_call.1} parent=1 // pred_check_branch
      %193 = sbr.rel (%p191) target = $region49
    $region48: #{tpu_custom_call.1} parent=1 // pred_region
      %v194 = vld [vmem:[#allocation2] sm:$0xff]
      %v195 = vld [vmem:[#allocation2 + $0x8] sm:$0xff]
      %v196 = vld [vmem:[#allocation2 + $0x10] sm:$0xff]
      %v197 = vld [vmem:[#allocation2 + $0x18] sm:$0xff]
      %v198 = vadd.f32 %v194, %v160
      %v199 = vadd.f32 %v195, %v162
      %v200 = vadd.f32 %v196, %v165
      %v201 = vadd.f32 %v197, %v167
      %202 = vst [vmem:[#allocation2] sm:$0xff] %v198
      %203 = vst [vmem:[#allocation2 + $0x8] sm:$0xff] %v199
      %204 = vst [vmem:[#allocation2 + $0x10] sm:$0xff] %v200
      %205 = vst [vmem:[#allocation2 + $0x18] sm:$0xff] %v201
      %v206 = vld [vmem:[#allocation3] sm:$0xff]
      %v207 = vld [vmem:[#allocation3 + $0x8] sm:$0xff]
      %v208 = vld [vmem:[#allocation3 + $0x10] sm:$0xff]
      %v209 = vld [vmem:[#allocation3 + $0x18] sm:$0xff]
      %v210 = vadd.f32 %v206, %v170
      %v211 = vadd.f32 %v207, %v172
      %v212 = vadd.f32 %v208, %v174
      %v213 = vadd.f32 %v209, %v176
      %vm214 = vcmask 7168
      %215 = vst.msk [vmem:[#allocation3] sm:$0xff] %vm214, %v210
      %216 = vst.msk [vmem:[#allocation3 + $0x8] sm:$0xff] %vm214, %v211
      %217 = vst.msk [vmem:[#allocation3 + $0x10] sm:$0xff] %vm214, %v212
      %218 = vst.msk [vmem:[#allocation3 + $0x18] sm:$0xff] %vm214, %v213
    $region49: #{tpu_custom_call.1} parent=1 // pred_fallthru
      _
    // Predicated region
    $region50: #{tpu_custom_call.1} parent=1 // pred_check
      %p219 = pneg %p177
    $region51: #{tpu_custom_call.1} parent=1 // pred_check_branch
      %221 = sbr.rel (%p219) target = $region53
    $region52: #{tpu_custom_call.1} parent=1 // pred_region
      %v222 = vld [vmem:[#allocation9] sm:$0x7]
      %v223 = vld [vmem:[#allocation2] sm:$0xff]
      %v224 = vld [vmem:[#allocation2 + $0x8] sm:$0xff]
      %v225 = vld [vmem:[#allocation2 + $0x10] sm:$0xff]
      %v226 = vld [vmem:[#allocation2 + $0x18] sm:$0xff]
      %v227 = vperm.slane %v222, 0
      %v228 = vmul.f32 %v223, %v227
      %v229 = vmul.f32 %v224, %v227
      %v230 = vmul.f32 %v225, %v227
      %v231 = vmul.f32 %v226, %v227
      %v232 = vperm.slane %v222, 1
      %v233 = vadd.f32 %v228, %v232
      %v234 = vadd.f32 %v229, %v232
      %v235 = vadd.f32 %v230, %v232
      %v236 = vadd.f32 %v231, %v232
      %v237 = vld [vmem:[#allocation3] sm:$0xff]
      %v238 = vld [vmem:[#allocation3 + $0x8] sm:$0xff]
      %v239 = vld [vmem:[#allocation3 + $0x10] sm:$0xff]
      %v240 = vld [vmem:[#allocation3 + $0x18] sm:$0xff]
      %242 = vset.pattern.permute.xlu0 0
      %243 = vperm.xlu0 %242, %v237
      %v244 = vpop.permute.xlu0 %243
      %247 = vset.pattern.permute.xlu0 0
      %248 = vperm.xlu0 %247, %v238
      %v249 = vpop.permute.xlu0 %248
      %252 = vset.pattern.permute.xlu0 0
      %253 = vperm.xlu0 %252, %v239
      %v254 = vpop.permute.xlu0 %253
      %257 = vset.pattern.permute.xlu0 0
      %258 = vperm.xlu0 %257, %v240
      %v259 = vpop.permute.xlu0 %258
      %v261 = vperm.slane %v222, 2
      %v262 = vmul.f32 %v244, %v261
      %v263 = vmul.f32 %v249, %v261
      %v264 = vmul.f32 %v254, %v261
      %v265 = vmul.f32 %v259, %v261
      %v266 = vsub.f32 %v233, %v262
      %v267 = vsub.f32 %v234, %v263
      %v268 = vsub.f32 %v235, %v264
      %v269 = vsub.f32 %v236, %v265
      %v270 = vld [vmem:[#allocation10] sm:$0xff]
      %v271 = vld [vmem:[#allocation10 + $0x8] sm:$0xff]
      %v272 = vld [vmem:[#allocation10 + $0x10] sm:$0xff]
      %v273 = vld [vmem:[#allocation10 + $0x18] sm:$0xff]
      %v274 = vmul.f32 %v266, %v270
      %v275 = vmul.f32 %v267, %v271
      %v276 = vmul.f32 %v268, %v272
      %v277 = vmul.f32 %v269, %v273
      %v278 = vld [vmem:[#allocation12] sm:$0xff]
      %v279 = vld [vmem:[#allocation12 + $0x8] sm:$0xff]
      %v280 = vld [vmem:[#allocation12 + $0x10] sm:$0xff]
      %v281 = vld [vmem:[#allocation12 + $0x18] sm:$0xff]
      %v282 = vadd.f32 %v274, %v278
      %v283 = vadd.f32 %v275, %v279
      %v284 = vadd.f32 %v276, %v280
      %v285 = vadd.f32 %v277, %v281
      %286 = vst [vmem:[#allocation13] sm:$0xff] %v282
      %287 = vst [vmem:[#allocation13 + $0x8] sm:$0xff] %v283
      %288 = vst [vmem:[#allocation13 + $0x10] sm:$0xff] %v284
      %289 = vst [vmem:[#allocation13 + $0x18] sm:$0xff] %v285
    $region53: #{tpu_custom_call.1} parent=1 // pred_fallthru
      _
    // Predicated region
    $region54: #{tpu_custom_call.1} parent=1 // pred_check
      _
    $region55: #{tpu_custom_call.1} parent=1 // pred_check_branch
      %291 = sbr.rel (0) target = $region57
    $region56: #{tpu_custom_call.1} parent=1 // pred_region
      %293 = vsyncadd [#allocation6], 0
      %s294 = sshll.u32 [#allocation13], 4
      %s295 = int_to_ptr.vmem [resolvable:$true] %s294
      %s296 = sshll.u32 %s5, 4
      %s297 = int_to_ptr.hbm [resolvable:$true] %s296
      %302 = dma.vmem_to_hbm [thread:$0]  %s295, 512, %s297, [#allocation6], 128, 128, 8
    $region57: #{tpu_custom_call.1} parent=1 // pred_fallthru
      _
    // Predicated region
    $region58: #{tpu_custom_call.1} parent=1 // pred_check
      _
    $region59: #{tpu_custom_call.1} parent=1 // pred_check_branch
      %304 = sbr.rel (0) target = $region61
    $region60: #{tpu_custom_call.1} parent=1 // pred_region
      %306 = dma.done [#allocation6], 512
    $region61: #{tpu_custom_call.1} parent=1 // pred_fallthru
      _
    %307 = vsyncpa [#allocation5], 1
    %308 = vsyncpa [#allocation8], 1
    %309 = vsyncpa [#allocation11], 1
    %310 = vsyncpa [#allocation6], 1

</llo_original>
